<compile_context>
chip_gen: v7x
topology: tpu7x:2x2x1
jax: 0.10.0
libtpu: 0.0.40
codegen_flags: <defaults>
</compile_context>

<pallas_src>
import functools

import jax
import jax.numpy as jnp
from jax.experimental import pallas as pl
from jax.experimental.pallas import tpu as pltpu

_EPS = 1e-12  # F.normalize default eps


def _round_up(v, m):
    return (v + m - 1) // m * m


def _cdiv(a, b):
    return (a + b - 1) // b


def _arch_config():
    """Per-generation tile caps / scoped-VMEM limit / multi-TensorCore flag."""
    try:
        kind = jax.devices()[0].device_kind.lower()
    except Exception:  # pragma: no cover - defensive
        kind = ""
    if "v7" in kind:
        # 64 MiB VMEM per TC, 2 TCs per chip -> conservative scoped limit and
        # make sure there are >= 2 parallel output blocks.
        return dict(tm=512, tn=512, tk=512, vmem=48 << 20, multi_tc=True)
    if "v6" in kind:
        return dict(tm=512, tn=512, tk=512, vmem=96 << 20, multi_tc=False)
    if "v5" in kind or "v4" in kind:
        multi = ("v4" in kind) or ("v5p" in kind)
        return dict(tm=256, tn=256, tk=512, vmem=64 << 20, multi_tc=multi)
    return dict(tm=256, tn=256, tk=512, vmem=48 << 20, multi_tc=False)


def _choose_tile(dim, grain, max_tile, slack=0.125):
    """Largest tile (multiple of `grain`, <= max_tile) whose block-rounded
    extent ceil(dim/t)*t stays within `slack` of the minimum achievable."""
    dim_g = _round_up(max(dim, 1), grain)
    if dim_g <= max_tile:
        return dim_g                       # single exact block
    best_tile = grain
    limit = dim_g * (1.0 + slack)          # dim_g is the minimal padded size
    t = grain
    while t <= max_tile:
        if _cdiv(dim, t) * t <= limit and t > best_tile:
            best_tile = t
        t += grain
    return best_tile


# --------------------------------------------------------------------------
# Fused normalize + cast + zero-K-pad pre-passes (one HBM read of x / w).
# --------------------------------------------------------------------------
def _x_prep_kernel(x_ref, o_ref, *, cin):
    rows = x_ref.shape[0]
    xv = x_ref[...].astype(jnp.float32)
    ssq = jnp.sum(xv * xv, axis=1, keepdims=True)
    inv = jax.lax.rsqrt(jnp.maximum(ssq, _EPS * _EPS))  # 1/max(||row||, eps)
    o_ref[:rows, :cin] = (xv * inv).astype(o_ref.dtype)
    pad_k = o_ref.shape[1] - cin
    if pad_k > 0:
        # K padding must be exact zeros (it multiplies real weight columns).
        o_ref[:rows, cin:] = jnp.zeros((rows, pad_k), o_ref.dtype)


def _w_prep_kernel(w_ref, o_ref, *, cin):
    cols = w_ref.shape[1]
    wv = w_ref[...].astype(jnp.float32)
    ssq = jnp.sum(wv * wv, axis=0, keepdims=True)
    inv = jax.lax.rsqrt(jnp.maximum(ssq, _EPS * _EPS))  # 1/max(||col||, eps)
    o_ref[:cin, :cols] = (wv * inv).astype(o_ref.dtype)
    pad_k = o_ref.shape[0] - cin
    if pad_k > 0:
        o_ref[cin:, :] = jnp.zeros((pad_k, o_ref.shape[1]), o_ref.dtype)


def _prep_x(x, n_p8, cin_p, compute_dtype, cfg):
    """(N, Cin) -> (N_p8, Cin_p) compute_dtype, rows normalized, K pad zero."""
    n, cin = x.shape
    cbytes = jnp.dtype(compute_dtype).itemsize
    if n >= 8:
        per_row = cin * x.dtype.itemsize * 2 + cin_p * cbytes * 2
        tr_mem = max(8, (cfg["vmem"] // 3) // max(per_row, 1) // 8 * 8)
        tr = max(8, min(256, 8 * (n // 8), tr_mem))
        grid = (_cdiv(n, tr),)
        in_rows, out_rows = tr, tr
    else:  # tiny batch: single full block
        grid = (1,)
        in_rows, out_rows = n, n_p8
    return pl.pallas_call(
        functools.partial(_x_prep_kernel, cin=cin),
        out_shape=jax.ShapeDtypeStruct((n_p8, cin_p), compute_dtype),
        grid=grid,
        in_specs=[pl.BlockSpec((in_rows, cin), lambda i: (i, 0))],
        out_specs=pl.BlockSpec((out_rows, cin_p), lambda i: (i, 0)),
        compiler_params=pltpu.CompilerParams(
            dimension_semantics=("parallel",),
            vmem_limit_bytes=cfg["vmem"]),
    )(x)


def _prep_w(w, cin_p, cout_p, compute_dtype, cfg):
    """(Cin, Cout) -> (Cin_p, Cout_p) compute_dtype, cols normalized, K pad 0."""
    cin, cout = w.shape
    cbytes = jnp.dtype(compute_dtype).itemsize
    # TODO(synk): for very large in_features the full-column block may exceed
    # VMEM; split the column-norm reduction into a K-tiled pass in that case.
    if cout >= 128:
        per_col = cin * w.dtype.itemsize * 2 + cin_p * cbytes * 2
        tc_mem = max(128, (cfg["vmem"] // 3) // max(per_col, 1) // 128 * 128)
        tc = max(128, min(512, 128 * (cout // 128), tc_mem))
        grid = (_cdiv(cout_p, tc),)
        in_cols, out_cols = tc, tc
    else:  # tiny out_features: single full block
        grid = (1,)
        in_cols, out_cols = cout, cout_p
    return pl.pallas_call(
        functools.partial(_w_prep_kernel, cin=cin),
        out_shape=jax.ShapeDtypeStruct((cin_p, cout_p), compute_dtype),
        grid=grid,
        in_specs=[pl.BlockSpec((cin, in_cols), lambda j: (0, j))],
        out_specs=pl.BlockSpec((cin_p, out_cols), lambda j: (0, j)),
        compiler_params=pltpu.CompilerParams(
            dimension_semantics=("parallel",),
            vmem_limit_bytes=cfg["vmem"]),
    )(w)


# --------------------------------------------------------------------------
# Matmul kernels on pre-normalized bf16 operands.
# --------------------------------------------------------------------------
def _matmul_kernel(x_ref, w_ref, o_ref):
    # Single-K path: whole reduction in one block, no scratch, no pl.when.
    o_ref[...] = jnp.dot(x_ref[...], w_ref[...],
                         preferred_element_type=jnp.float32).astype(o_ref.dtype)


def _matmul_kernel_ktiled(x_ref, w_ref, o_ref, acc_ref):
    @pl.when(pl.program_id(2) == 0)
    def _():
        acc_ref[...] = jnp.zeros_like(acc_ref)

    acc_ref[...] += jnp.dot(x_ref[...], w_ref[...],
                            preferred_element_type=jnp.float32)

    @pl.when(pl.program_id(2) == pl.num_programs(2) - 1)
    def _():
        o_ref[...] = acc_ref[...].astype(o_ref.dtype)


def normed_linear(x, weight, *, use_bf16_mxu=True, out_dtype=jnp.float32,
                  single_k=None):
    n, cin = x.shape
    cin_w, cout = weight.shape
    assert cin == cin_w

    cfg = _arch_config()
    compute_dtype = jnp.bfloat16 if use_bf16_mxu else jnp.float32
    cbytes = jnp.dtype(compute_dtype).itemsize

    n_p8 = _round_up(n, 8)
    cout_p = _round_up(cout, 128)
    cin_128 = _round_up(cin, 128)

    tm = _choose_tile(n, 8, cfg["tm"])
    tn = _choose_tile(cout, 128, cfg["tn"])

    # Drop the K grid axis (and the accumulator) whenever the full reduction
    # comfortably fits VMEM (double-buffered inputs + output).
    if single_k is None:
        need = 2 * cin_128 * (tm + tn) * cbytes + 2 * tm * tn * 4
        single_k = need <= cfg["vmem"] // 2
    if single_k:
        tk = cin_128
        cin_p = cin_128
    else:
        tk = _choose_tile(cin, 128, cfg["tk"])
        cin_p = _round_up(cin, tk)

    # v7x (2 TensorCores): make sure the parallel axes have >= 2 blocks.
    if cfg["multi_tc"] and _cdiv(n_p8, tm) * _cdiv(cout_p, tn) < 2:
        if cout_p >= 256:
            tn = _round_up(_cdiv(cout_p, 2), 128)
        elif n_p8 >= 16:
            tm = _round_up(_cdiv(n_p8, 2), 8)

    gm, gn, gk = _cdiv(n_p8, tm), _cdiv(cout_p, tn), cin_p // tk

    # Fused normalize + bf16-cast + zero-K-pad pre-passes.
    x_p = _prep_x(x, n_p8, cin_p, compute_dtype, cfg)
    w_p = _prep_w(weight, cin_p, cout_p, compute_dtype, cfg)

    flops = 2 * (gm * tm) * (gn * tn) * cin_p
    bytes_accessed = (gn * (gm * tm) * cin_p * cbytes        # x re-read gn times
                      + gm * cin_p * (gn * tn) * cbytes      # w re-read gm times
                      + (gm * tm) * (gn * tn) * jnp.dtype(out_dtype).itemsize)
    cost = pl.CostEstimate(flops=flops, transcendentals=0,
                           bytes_accessed=bytes_accessed)

    if single_k:
        out_p = pl.pallas_call(
            _matmul_kernel,
            out_shape=jax.ShapeDtypeStruct((n_p8, cout_p), out_dtype),
            grid=(gm, gn),
            in_specs=[pl.BlockSpec((tm, tk), lambda i, j: (i, 0)),
                      pl.BlockSpec((tk, tn), lambda i, j: (0, j))],
            out_specs=pl.BlockSpec((tm, tn), lambda i, j: (i, j)),
            compiler_params=pltpu.CompilerParams(
                dimension_semantics=("parallel", "parallel"),
                vmem_limit_bytes=cfg["vmem"]),
            cost_estimate=cost,
        )(x_p, w_p)
    else:
        out_p = pl.pallas_call(
            _matmul_kernel_ktiled,
            out_shape=jax.ShapeDtypeStruct((n_p8, cout_p), out_dtype),
            grid=(gm, gn, gk),
            in_specs=[pl.BlockSpec((tm, tk), lambda i, j, k: (i, k)),
                      pl.BlockSpec((tk, tn), lambda i, j, k: (k, j))],
            out_specs=pl.BlockSpec((tm, tn), lambda i, j, k: (i, j)),
            scratch_shapes=[pltpu.VMEM((tm, tn), jnp.float32)],
            compiler_params=pltpu.CompilerParams(
                dimension_semantics=("parallel", "parallel", "arbitrary"),
                vmem_limit_bytes=cfg["vmem"]),
            cost_estimate=cost,
        )(x_p, w_p)

    if (n_p8, cout_p) != (n, cout):
        out_p = out_p[:n, :cout]
    return out_p


# --------------------------------------------------------------------------
# Init + reference (mirror the PyTorch module).
# --------------------------------------------------------------------------
def init_weight(key, in_features, out_features):
    # Mirror: weight.uniform_(-1, 1).renorm_(2, 1, 1e-5).mul_(1e5)
    w = jax.random.uniform(
        key, (in_features, out_features), jnp.float32, minval=-1.0, maxval=1.0)
    col_norm = jnp.sqrt(jnp.sum(w * w, axis=0, keepdims=True))
    scale = jnp.minimum(1.0, 1e-5 / jnp.maximum(col_norm, 1e-7))
    return w * scale * 1e5


def reference(x, weight):
    xn = x / jnp.maximum(jnp.linalg.norm(x, axis=1, keepdims=True), _EPS)
    wn = weight / jnp.maximum(jnp.linalg.norm(weight, axis=0, keepdims=True),
                              _EPS)
    return jnp.dot(xn, wn, precision=jax.lax.Precision.HIGHEST)


if __name__ == "__main__":
    key = jax.random.PRNGKey(0)

    cases = [
        # module-demo scale, bf16 MXU path
        dict(n=8, cin=32, cout=16, kwargs={}, atol=2e-2),
        # exact-parity path (f32 operands end to end)
        dict(n=8, cin=32, cout=16, kwargs=dict(use_bf16_mxu=False), atol=5e-3),
        # ragged M / K / Cout, multi-block pre-pass, single-K matmul
        dict(n=260, cin=520, cout=300, kwargs={}, atol=2e-2),
        # force the K-tiled accumulation path
        dict(n=64, cin=640, cout=256, kwargs=dict(single_k=False), atol=2e-2),
    ]

    for c in cases:
        key, kx, kw = jax.random.split(key, 3)
        x = jax.random.normal(kx, (c["n"], c["cin"]), jnp.float32)
        weight = init_weight(kw, c["cin"], c["cout"])

        out = normed_linear(x, weight, **c["kwargs"])
        jax.block_until_ready(out)

        ref = reference(x, weight)
        assert out.shape == (c["n"], c["cout"])
        err = float(jnp.max(jnp.abs(out - ref)))
        assert err <= c["atol"], (c["n"], c["cin"], c["cout"], err)

    print("KERNEL_OK")
</pallas_src>

<mosaic_0001>
module attributes {stable_mosaic.version = 11 : i64} {
  func.func @_x_prep_kernel(%arg0: i32, %arg1: memref<8x32xf32, #tpu.memory_space<vmem>>, %arg2: memref<8x128xbf16, #tpu.memory_space<vmem>>) attributes {dimension_semantics = [#tpu.dimension_semantics<parallel>], iteration_bounds = array<i64: 1>, scalar_prefetch = 0 : i64, scratch_operands = 0 : i64, tpu.core_type = #tpu.core_type<tc>, window_params = [{transform_indices = @transform_0, window_bounds = array<i64: 8, 32>}, {transform_indices = @transform_1, window_bounds = array<i64: 8, 128>}]} {
    %c0 = arith.constant 0 : index
    %c0_0 = arith.constant 0 : index
    %0 = vector.load %arg1[%c0, %c0_0] : memref<8x32xf32, #tpu.memory_space<vmem>>, vector<8x32xf32>
    %1 = arith.mulf %0, %0 : vector<8x32xf32>
    %cst = arith.constant dense<0.000000e+00> : vector<8xf32>
    %2 = vector.multi_reduction <add>, %1, %cst [1] : vector<8x32xf32> to vector<8xf32>
    %3 = vector.shape_cast %2 : vector<8xf32> to vector<8x1xf32>
    %cst_1 = arith.constant 1.000000e-24 : f32
    %4 = vector.broadcast %cst_1 : f32 to vector<8x1xf32>
    %5 = arith.maximumf %3, %4 : vector<8x1xf32>
    %6 = math.rsqrt %5 : vector<8x1xf32>
    %7 = vector.broadcast %6 : vector<8x1xf32> to vector<8x32xf32>
    %8 = arith.mulf %0, %7 : vector<8x32xf32>
    %9 = arith.truncf %8 : vector<8x32xf32> to vector<8x32xbf16>
    %c0_2 = arith.constant 0 : index
    %c0_3 = arith.constant 0 : index
    %10 = vector.load %arg2[%c0_2, %c0_3] : memref<8x128xbf16, #tpu.memory_space<vmem>>, vector<8x32xbf16>
    tpu.vector_store %arg2[%c0_2, %c0_3], %9 {strides = array<i32>} : memref<8x128xbf16, #tpu.memory_space<vmem>>, vector<8x32xbf16>,
    %cst_4 = arith.constant 0.000000e+00 : bf16
    %11 = vector.broadcast %cst_4 : bf16 to vector<8x96xbf16>
    %c0_5 = arith.constant 0 : index
    %c32 = arith.constant 32 : index
    %12 = vector.load %arg2[%c0_5, %c32] : memref<8x128xbf16, #tpu.memory_space<vmem>>, vector<8x96xbf16>
    tpu.vector_store %arg2[%c0_5, %c32], %11 {strides = array<i32>} : memref<8x128xbf16, #tpu.memory_space<vmem>>, vector<8x96xbf16>,
    return
  }
  func.func @transform_0(%arg0: i32) -> (i32, i32) {
    %c0_i32 = arith.constant 0 : i32
    %c0_i32_0 = arith.constant 0 : i32
    return %arg0, %c0_i32 : i32, i32
  }
  func.func @transform_1(%arg0: i32) -> (i32, i32) {
    %c0_i32 = arith.constant 0 : i32
    %c0_i32_0 = arith.constant 0 : i32
    return %arg0, %c0_i32 : i32, i32
  }
}

</mosaic_0001>

<llo_original>
// kernel: tpu_custom_call.1
$region0: #{tpu_custom_call.1}
  #allocation0 [shape = 'u32[]', space=smem, size = 0x4, offset = 0x4, fixed_abs, tag = 'smem constant byte address 0x4 - core index']
  #allocation1 [shape = 'u32[144,128]{1,0:T(1,128)}', space=vmem, size = 0x12000, scoped, tag = 'internal scratch']
  %s0 = inlined_call_operand.hbm [shape: f32[8,32], index: 0, kind: input, shape index: {}]
  %s1 = inlined_call_operand.hbm [shape: bf16[8,128], index: 1, kind: output, shape index: {}]
  %s2 = sld [smem:[#allocation0]]
  $region18: #{tpu_custom_call.1} parent=0
    _
  %s4 = ssub.s32 1, %s2
  %s5 = scalar_select 0, %s4, %s2
  $region1: #{tpu_custom_call.1} parent=0
    #allocation2 [shape = 'u8[4096]{0}', space=vmem, size = 0x1000, scoped, tag = 'input window, operand 0, single buffered']
    #allocation3 [shape = 's32[1]{0}', space=sflag, size = 0x4, scoped, tag = 'scoped memory for tpu_custom_call.1']
    #allocation4 [shape = 's32[1]{0}', space=sflag, size = 0x4, scoped, tag = 'scoped memory for tpu_custom_call.1']
    #allocation5 [shape = 'u8[2048]{0}', space=vmem, size = 0x800, scoped, tag = 'output window, operand 0, single buffered']
    %6 = vsyncpa [#allocation3], 0
    %7 = vsyncpa [#allocation4], 0
    // Predicated region
    $region2: #{tpu_custom_call.1} parent=1 // pred_check
      _
    $region3: #{tpu_custom_call.1} parent=1 // pred_check_branch
      %9 = sbr.rel (0) target = $region5
    $region4: #{tpu_custom_call.1} parent=1 // pred_region
      %s11 = ssub.s32 128, 128
      %12 = vsyncadd [#allocation3], %s11
      %s14 = sshll.u32 [#allocation2], 4
      %s15 = int_to_ptr.vmem [resolvable:$true] %s14
      %17 = dma.hbm_to_vmem [thread:$0]  %s0, 128, %s15, [#allocation3]
    $region5: #{tpu_custom_call.1} parent=1 // pred_fallthru
      _
    // Predicated region
    $region6: #{tpu_custom_call.1} parent=1 // pred_check
      _
    $region7: #{tpu_custom_call.1} parent=1 // pred_check_branch
      %19 = sbr.rel (0) target = $region9
    $region8: #{tpu_custom_call.1} parent=1 // pred_region
      %20 = dma.done [#allocation3], 128
    $region9: #{tpu_custom_call.1} parent=1 // pred_fallthru
      _
    %v22 = vld [vmem:[#allocation2] sm:$0xff]
    %v23 = vmul.f32 %v22, %v22
    %vm24 = vcmask 261120
    %v25 = vsel %vm24, %v23, 0.0
    %26 = vadd.xlane.f32.xlu0 %v25
    %v27 = vpop.xlane.xlu0 %26
    %v28 = vmax.f32 %v27, 1e-24
    %v29 = vrsqrt.pop %v28
    %v30 = vmul.f32 %v22, %v29
    %v31 = vpack.c.bf16 %v30, %v30
    %vm32 = vcmask 257024
    %33 = vst.msk [vmem:[#allocation5] sm:$0xf] %vm32, %v31
    %vm34 = vcmask 1043712
    %35 = vst.msk [vmem:[#allocation5] sm:$0xf] %vm34, 0
    // Predicated region
    $region10: #{tpu_custom_call.1} parent=1 // pred_check
      _
    $region11: #{tpu_custom_call.1} parent=1 // pred_check_branch
      %37 = sbr.rel (0) target = $region13
    $region12: #{tpu_custom_call.1} parent=1 // pred_region
      %s39 = ssub.s32 64, 64
      %40 = vsyncadd [#allocation4], %s39
      %s42 = sshll.u32 [#allocation5], 4
      %s43 = int_to_ptr.vmem [resolvable:$true] %s42
      %45 = dma.vmem_to_hbm [thread:$0]  %s43, 64, %s1, [#allocation4]
    $region13: #{tpu_custom_call.1} parent=1 // pred_fallthru
      _
    // Predicated region
    $region14: #{tpu_custom_call.1} parent=1 // pred_check
      _
    $region15: #{tpu_custom_call.1} parent=1 // pred_check_branch
      %47 = sbr.rel (0) target = $region17
    $region16: #{tpu_custom_call.1} parent=1 // pred_region
      %48 = dma.done [#allocation4], 64
    $region17: #{tpu_custom_call.1} parent=1 // pred_fallthru
      _
    %49 = vsyncpa [#allocation3], 1
    %50 = vsyncpa [#allocation4], 1

</llo_original>
